<compile_context>
chip_gen: v7x
topology: tpu7x:2x2x1
jax: 0.10.0
libtpu: 0.0.40
codegen_flags: <defaults>
</compile_context>

<pallas_src>
import functools

import jax
import jax.numpy as jnp
from jax.experimental import pallas as pl
from jax.experimental.pallas import tpu as pltpu


def _round_up(a: int, b: int) -> int:
    return (a + b - 1) // b * b


def _best_tile(dim_p: int, target: int) -> int:
    """Largest multiple-of-128 divisor of dim_p that is <= target (>= 128)."""
    best = 128
    cand = 128
    limit = min(target, dim_p)
    while cand <= limit:
        if dim_p % cand == 0:
            best = cand
        cand += 128
    return best


def _lora_linear_kernel(x_ref, wm_ref, wd_ref, wu_ref, o_ref,
                        acc_ref, down_ref, *, tn, tk, reuse_down):
    """One (i, j, k) grid step.

    x_ref:    (tm, tk)   activation row tile, k-th contraction slice
    wm_ref:   (tk, tn)   main weight tile (pre-transposed to (in, out))
    wd_ref:   (H_p, r)   FULL lora_down weight (pre-transposed), VMEM-resident
    wu_ref:   (r, H_p)   FULL lora_up weight (pre-transposed, alpha folded in)
    o_ref:    (tm, tn)   output tile
    acc_ref:  (tm, tn)   f32 main-path accumulator (carried over k)
    down_ref: (tm, r)    f32 LoRA-down accumulator
    """
    j = pl.program_id(1)
    k = pl.program_id(2)
    nk = pl.num_programs(2)

    x = x_ref[...]

    @pl.when(k == 0)
    def _():
        acc_ref[...] = jnp.zeros_like(acc_ref)

    # Main path: accumulate x_tile @ Wm_tile over the contraction axis.
    acc_ref[...] += jnp.dot(x, wm_ref[...], preferred_element_type=jnp.float32)

    # LoRA down path: x_tile @ Wd_chunk.  Wd is VMEM-resident; slice the k-th
    # contraction chunk in-kernel (no per-step HBM DMA for LoRA weights).
    k_start = pl.multiple_of(k * tk, tk)
    wd_chunk = wd_ref[pl.ds(k_start, tk), :]

    if reuse_down:
        # The down product is independent of the output-column tile: compute it
        # only during the j == 0 sweep and reuse the scratch for all j > 0.
        # Correct ONLY because the j axis is iterated sequentially ("arbitrary").
        @pl.when(j == 0)
        def _():
            @pl.when(k == 0)
            def _():
                down_ref[...] = jnp.zeros_like(down_ref)
            down_ref[...] += jnp.dot(x, wd_chunk,
                                     preferred_element_type=jnp.float32)
    else:
        # Recompute per (i, j): extra 2*tm*tk*r flops (negligible, r << H) but
        # lets the j axis be marked "parallel" (v7x megacore for small M).
        @pl.when(k == 0)
        def _():
            down_ref[...] = jnp.zeros_like(down_ref)
        down_ref[...] += jnp.dot(x, wd_chunk,
                                 preferred_element_type=jnp.float32)

    # Finalize on the last k step: apply the lora_up chunk and write the tile.
    @pl.when(k == nk - 1)
    def _():
        j_start = pl.multiple_of(j * tn, tn)
        wu_chunk = wu_ref[:, pl.ds(j_start, tn)]
        up = jnp.dot(down_ref[...].astype(wu_ref.dtype), wu_chunk,
                     preferred_element_type=jnp.float32)
        o_ref[...] = (acc_ref[...] + up).astype(o_ref.dtype)


@functools.partial(
    jax.jit, static_argnames=("alpha", "tm", "tn", "tk", "compute_dtype"))
def lora_linear(x, w_main, w_down, w_up, *, alpha=1.0,
                tm=256, tn=512, tk=512, compute_dtype=None):
    """LoRALinear forward: y = x @ Wm^T + alpha * ((x @ Wd^T) @ Wu^T).

    x:       (..., H)   activations (leading dims flattened into rows)
    w_main:  (H, H)     nn.Linear weight, PyTorch (out, in) layout
    w_down:  (r, H)     lora_down weight (r, out)
    w_up:    (H, r)     lora_up weight (out, r)
    """
    orig_shape = x.shape
    orig_dtype = x.dtype
    H = orig_shape[-1]
    r = w_down.shape[0]
    assert w_main.shape == (H, H)
    assert w_down.shape == (r, H)
    assert w_up.shape == (H, r)

    x2 = x.reshape(-1, H)
    M = x2.shape[0]

    # Fold alpha into the up-projection weight once (before any cast); removes
    # the per-element VPU multiply from the kernel's finalize path.
    if alpha != 1.0:
        w_up = w_up * jnp.asarray(alpha, dtype=w_up.dtype)

    cdt = jnp.dtype(compute_dtype) if compute_dtype is not None else x2.dtype
    x2 = x2.astype(cdt)
    w_main = w_main.astype(cdt)
    w_down = w_down.astype(cdt)
    w_up = w_up.astype(cdt)
    out_dtype = cdt

    # Pre-transpose once (wrapper-side layout plumbing; no in-kernel '.T').
    wm_t = w_main.T            # (in=H, out=H)
    wd_t = w_down.T            # (H, r)
    wu_t = w_up.T              # (r, H)

    # --- Tile selection -----------------------------------------------------
    H_p = _round_up(H, 128)
    tn_e = _best_tile(H_p, tn)      # largest 128-multiple divisor of H_p <= tn
    tk_e = _best_tile(H_p, tk)
    # Row tile rounds up to the compute dtype's sublane multiple so bf16/int8
    # never hit partial-sublane layouts.
    sublane = {2: 16, 1: 32}.get(jnp.dtype(cdt).itemsize, 8)
    tm_e = min(tm, _round_up(M, sublane))
    M_p = _round_up(M, tm_e)

    if M_p != M or H_p != H:
        x2 = jnp.pad(x2, ((0, M_p - M), (0, H_p - H)))
    if H_p != H:
        wm_t = jnp.pad(wm_t, ((0, H_p - H), (0, H_p - H)))
        wd_t = jnp.pad(wd_t, ((0, H_p - H), (0, 0)))
        wu_t = jnp.pad(wu_t, ((0, 0), (0, H_p - H)))

    n_i = M_p // tm_e
    n_j = H_p // tn_e
    n_k = H_p // tk_e
    grid = (n_i, n_j, n_k)

    # Single-row-tile (decode-like) shapes: recompute the tiny down product per
    # column tile so j can be "parallel" (shards across v7x's two TensorCores).
    # Otherwise reuse the j==0 down accumulation; j MUST then stay sequential.
    reuse_down = n_i > 1
    dim_semantics = (("parallel", "arbitrary", "arbitrary") if reuse_down
                     else ("parallel", "parallel", "arbitrary"))

    itemsize = jnp.dtype(cdt).itemsize
    cost = pl.CostEstimate(
        flops=2 * M_p * H_p * H_p + 4 * M_p * H_p * r,
        transcendentals=0,
        bytes_accessed=(
            n_i * H_p * H_p * itemsize        # W_main re-streamed per row tile
            + n_j * M_p * H_p * itemsize      # x re-streamed per column tile
            + M_p * H_p * itemsize            # output
            + 2 * H_p * r * itemsize          # LoRA weights (fetched once)
        ),
    )

    out = pl.pallas_call(
        functools.partial(_lora_linear_kernel,
                          tn=tn_e, tk=tk_e, reuse_down=reuse_down),
        out_shape=jax.ShapeDtypeStruct((M_p, H_p), out_dtype),
        grid_spec=pltpu.PrefetchScalarGridSpec(
            num_scalar_prefetch=0,
            grid=grid,
            in_specs=[
                pl.BlockSpec((tm_e, tk_e), lambda i, j, k: (i, k)),  # x
                pl.BlockSpec((tk_e, tn_e), lambda i, j, k: (k, j)),  # W_main^T
                # LoRA weights: fully VMEM-resident (constant block index),
                # sliced in-kernel with pl.ds.
                pl.BlockSpec((H_p, r), lambda i, j, k: (0, 0)),      # W_down^T
                pl.BlockSpec((r, H_p), lambda i, j, k: (0, 0)),      # W_up^T
            ],
            out_specs=pl.BlockSpec((tm_e, tn_e), lambda i, j, k: (i, j)),
            scratch_shapes=[
                pltpu.VMEM((tm_e, tn_e), jnp.float32),   # main accumulator
                pltpu.VMEM((tm_e, r), jnp.float32),      # LoRA-down accumulator
            ],
        ),
        compiler_params=pltpu.CompilerParams(
            dimension_semantics=dim_semantics,
            # Explicit scoped-VMEM budget: f32 (256,512,512) working set is
            # ~7 MiB double-buffered; 32 MiB is safe on v5e/v6e (128 MiB) and
            # within v7x's 64 MiB physical VMEM.
            vmem_limit_bytes=32 * 1024 * 1024,
        ),
        cost_estimate=cost,
    )(x2, wm_t, wd_t, wu_t)

    out = out[:M, :H].astype(orig_dtype)
    return out.reshape(orig_shape)


def lora_linear_ref(x, w_main, w_down, w_up, alpha=1.0):
    return x @ w_main.T + alpha * ((x @ w_down.T) @ w_up.T)


def _make_inputs(key, H, R, B, S):
    k_x, k_main, k_down, k_up = jax.random.split(key, 4)
    x = jax.random.normal(k_x, (B, S, H), dtype=jnp.float32)
    # W_main: PyTorch Linear default init ~ U(-1/sqrt(fan_in), 1/sqrt(fan_in)).
    bound = 1.0 / jnp.sqrt(jnp.float32(H))
    w_main = jax.random.uniform(k_main, (H, H), dtype=jnp.float32,
                                minval=-bound, maxval=bound)
    # lora_down: normal(std=1/16) as in the module.  lora_up is zero-init in
    # the module; use small random values here so the LoRA path is exercised.
    w_down = (1.0 / 16.0) * jax.random.normal(k_down, (R, H), dtype=jnp.float32)
    w_up = 0.1 * jax.random.normal(k_up, (H, R), dtype=jnp.float32)
    return x, w_main, w_down, w_up


if __name__ == "__main__":
    key0, key1 = jax.random.split(jax.random.PRNGKey(0), 2)

    # Case 1: tiny decode-like shape (in == out == 32, r == 8, batch=2, seq=8).
    # Single row tile -> recompute-down path with the j axis "parallel".
    x, w_main, w_down, w_up = _make_inputs(key0, H=32, R=8, B=2, S=8)
    expected = lora_linear_ref(x, w_main, w_down, w_up)

    out = jax.block_until_ready(lora_linear(x, w_main, w_down, w_up))
    assert out.shape == x.shape
    assert jnp.allclose(out, expected, atol=1e-5, rtol=1e-5), "case1 f32 mismatch"

    # bf16 compute path (v5e/v6e/v7x MXU-friendly); looser tolerance.
    out_bf16 = jax.block_until_ready(
        lora_linear(x, w_main, w_down, w_up, compute_dtype=jnp.bfloat16))
    assert jnp.allclose(out_bf16, expected, atol=5e-2, rtol=5e-2), \
        "case1 bf16 mismatch"

    # Case 2: multi-tile grid (2 x 2 x 2) with non-unit alpha; exercises the
    # k-accumulator carry and the j==0 LoRA-down reuse path.
    x2, w_main2, w_down2, w_up2 = _make_inputs(key1, H=256, R=8, B=2, S=64)
    expected2 = lora_linear_ref(x2, w_main2, w_down2, w_up2, alpha=0.5)
    out2 = jax.block_until_ready(
        lora_linear(x2, w_main2, w_down2, w_up2, alpha=0.5,
                    tm=64, tn=128, tk=128))
    assert out2.shape == x2.shape
    assert jnp.allclose(out2, expected2, atol=1e-3, rtol=1e-3), "case2 mismatch"

    print("KERNEL_OK")
</pallas_src>

<mosaic_0001>
module attributes {stable_mosaic.version = 11 : i64} {
  func.func @_lora_linear_kernel(%arg0: i32, %arg1: i32, %arg2: i32, %arg3: memref<16x128xf32, #tpu.memory_space<vmem>>, %arg4: memref<128x128xf32, #tpu.memory_space<vmem>>, %arg5: memref<128x8xf32, #tpu.memory_space<vmem>>, %arg6: memref<8x128xf32, #tpu.memory_space<vmem>>, %arg7: memref<16x128xf32, #tpu.memory_space<vmem>>, %arg8: memref<16x128xf32, #tpu.memory_space<vmem>>, %arg9: memref<16x8xf32, #tpu.memory_space<vmem>>) attributes {dimension_semantics = [#tpu.dimension_semantics<parallel>, #tpu.dimension_semantics<parallel>, #tpu.dimension_semantics<arbitrary>], iteration_bounds = array<i64: 1, 1, 1>, scalar_prefetch = 0 : i64, scratch_operands = 2 : i64, tpu.core_type = #tpu.core_type<tc>, window_params = [{transform_indices = @transform_0, window_bounds = array<i64: 16, 128>}, {transform_indices = @transform_1, window_bounds = array<i64: 128, 128>}, {pipeline_mode = #tpu.pipeline_mode<synchronous>, transform_indices = @transform_2, window_bounds = array<i64: 128, 8>}, {pipeline_mode = #tpu.pipeline_mode<synchronous>, transform_indices = @transform_3, window_bounds = array<i64: 8, 128>}, {transform_indices = @transform_4, window_bounds = array<i64: 16, 128>}]} {
    %c0 = arith.constant 0 : index
    %c0_0 = arith.constant 0 : index
    %0 = vector.load %arg3[%c0, %c0_0] : memref<16x128xf32, #tpu.memory_space<vmem>>, vector<16x128xf32>
    %c0_i32 = arith.constant 0 : i32
    %1 = arith.cmpi eq, %arg2, %c0_i32 : i32
    %2 = arith.extui %1 : i1 to i32
    %c0_i32_1 = arith.constant 0 : i32
    %3 = arith.cmpi ne, %2, %c0_i32_1 : i32
    scf.if %3 {
      %cst_18 = arith.constant 0.000000e+00 : f32
      %23 = vector.broadcast %cst_18 : f32 to vector<16x128xf32>
      %c0_19 = arith.constant 0 : index
      %c0_20 = arith.constant 0 : index
      %24 = vector.load %arg8[%c0_19, %c0_20] : memref<16x128xf32, #tpu.memory_space<vmem>>, vector<16x128xf32>
      tpu.vector_store %arg8[%c0_19, %c0_20], %23 {strides = array<i32>} : memref<16x128xf32, #tpu.memory_space<vmem>>, vector<16x128xf32>,
    } else {
    }
    %c0_2 = arith.constant 0 : index
    %c0_3 = arith.constant 0 : index
    %4 = vector.load %arg8[%c0_2, %c0_3] : memref<16x128xf32, #tpu.memory_space<vmem>>, vector<16x128xf32>
    %c0_4 = arith.constant 0 : index
    %c0_5 = arith.constant 0 : index
    %5 = vector.load %arg4[%c0_4, %c0_5] : memref<128x128xf32, #tpu.memory_space<vmem>>, vector<128x128xf32>
    %cst = arith.constant dense<0.000000e+00> : vector<16x128xf32>
    %6 = tpu.matmul %0, %5, %cst {dimension_numbers = #tpu.dot_dimension_numbers<[1], [0], [0], [1], [0, 0, 1, 1], [], []>} : vector<16x128xf32>, vector<128x128xf32>, vector<16x128xf32> -> vector<16x128xf32>
    %7 = arith.addf %4, %6 : vector<16x128xf32>
    %c0_6 = arith.constant 0 : index
    %c0_7 = arith.constant 0 : index
    %8 = vector.load %arg8[%c0_6, %c0_7] : memref<16x128xf32, #tpu.memory_space<vmem>>, vector<16x128xf32>
    tpu.vector_store %arg8[%c0_6, %c0_7], %7 {strides = array<i32>} : memref<16x128xf32, #tpu.memory_space<vmem>>, vector<16x128xf32>,
    %c128_i32 = arith.constant 128 : i32
    %9 = arith.muli %arg2, %c128_i32 : i32
    %10 = tpu.assume_multiple %9, 128 : i32
    %11 = arith.index_cast %10 : i32 to index
    %c0_8 = arith.constant 0 : index
    %12 = vector.load %arg5[%11, %c0_8] : memref<128x8xf32, #tpu.memory_space<vmem>>, vector<128x8xf32>
    %c0_i32_9 = arith.constant 0 : i32
    %13 = arith.cmpi eq, %arg2, %c0_i32_9 : i32
    %14 = arith.extui %13 : i1 to i32
    %c0_i32_10 = arith.constant 0 : i32
    %15 = arith.cmpi ne, %14, %c0_i32_10 : i32
    scf.if %15 {
      %cst_18 = arith.constant 0.000000e+00 : f32
      %23 = vector.broadcast %cst_18 : f32 to vector<16x8xf32>
      %c0_19 = arith.constant 0 : index
      %c0_20 = arith.constant 0 : index
      %24 = vector.load %arg9[%c0_19, %c0_20] : memref<16x8xf32, #tpu.memory_space<vmem>>, vector<16x8xf32>
      tpu.vector_store %arg9[%c0_19, %c0_20], %23 {strides = array<i32>} : memref<16x8xf32, #tpu.memory_space<vmem>>, vector<16x8xf32>,
    } else {
    }
    %c0_11 = arith.constant 0 : index
    %c0_12 = arith.constant 0 : index
    %16 = vector.load %arg9[%c0_11, %c0_12] : memref<16x8xf32, #tpu.memory_space<vmem>>, vector<16x8xf32>
    %cst_13 = arith.constant dense<0.000000e+00> : vector<16x8xf32>
    %17 = tpu.matmul %0, %12, %cst_13 {dimension_numbers = #tpu.dot_dimension_numbers<[1], [0], [0], [1], [0, 0, 1, 1], [], []>} : vector<16x128xf32>, vector<128x8xf32>, vector<16x8xf32> -> vector<16x8xf32>
    %18 = arith.addf %16, %17 : vector<16x8xf32>
    %c0_14 = arith.constant 0 : index
    %c0_15 = arith.constant 0 : index
    %19 = vector.load %arg9[%c0_14, %c0_15] : memref<16x8xf32, #tpu.memory_space<vmem>>, vector<16x8xf32>
    tpu.vector_store %arg9[%c0_14, %c0_15], %18 {strides = array<i32>} : memref<16x8xf32, #tpu.memory_space<vmem>>, vector<16x8xf32>,
    %c0_i32_16 = arith.constant 0 : i32
    %20 = arith.cmpi eq, %arg2, %c0_i32_16 : i32
    %21 = arith.extui %20 : i1 to i32
    %c0_i32_17 = arith.constant 0 : i32
    %22 = arith.cmpi ne, %21, %c0_i32_17 : i32
    scf.if %22 {
      %c128_i32_18 = arith.constant 128 : i32
      %23 = arith.muli %arg1, %c128_i32_18 : i32
      %24 = tpu.assume_multiple %23, 128 : i32
      %c0_19 = arith.constant 0 : index
      %25 = arith.index_cast %24 : i32 to index
      %26 = vector.load %arg6[%c0_19, %25] : memref<8x128xf32, #tpu.memory_space<vmem>>, vector<8x128xf32>
      %c0_20 = arith.constant 0 : index
      %c0_21 = arith.constant 0 : index
      %27 = vector.load %arg9[%c0_20, %c0_21] : memref<16x8xf32, #tpu.memory_space<vmem>>, vector<16x8xf32>
      %cst_22 = arith.constant dense<0.000000e+00> : vector<16x128xf32>
      %28 = tpu.matmul %27, %26, %cst_22 {dimension_numbers = #tpu.dot_dimension_numbers<[1], [0], [0], [1], [0, 0, 1, 1], [], []>} : vector<16x8xf32>, vector<8x128xf32>, vector<16x128xf32> -> vector<16x128xf32>
      %c0_23 = arith.constant 0 : index
      %c0_24 = arith.constant 0 : index
      %29 = vector.load %arg8[%c0_23, %c0_24] : memref<16x128xf32, #tpu.memory_space<vmem>>, vector<16x128xf32>
      %30 = arith.addf %29, %28 : vector<16x128xf32>
      %c0_25 = arith.constant 0 : index
      %c0_26 = arith.constant 0 : index
      %31 = vector.load %arg7[%c0_25, %c0_26] : memref<16x128xf32, #tpu.memory_space<vmem>>, vector<16x128xf32>
      tpu.vector_store %arg7[%c0_25, %c0_26], %30 {strides = array<i32>} : memref<16x128xf32, #tpu.memory_space<vmem>>, vector<16x128xf32>,
    } else {
    }
    return
  }
  func.func @transform_0(%arg0: i32, %arg1: i32, %arg2: i32) -> (i32, i32) {
    %c0_i32 = arith.constant 0 : i32
    return %arg0, %arg2 : i32, i32
  }
  func.func @transform_1(%arg0: i32, %arg1: i32, %arg2: i32) -> (i32, i32) {
    %c0_i32 = arith.constant 0 : i32
    return %arg2, %arg1 : i32, i32
  }
  func.func @transform_2(%arg0: i32, %arg1: i32, %arg2: i32) -> (i32, i32) {
    %c0_i32 = arith.constant 0 : i32
    %c0_i32_0 = arith.constant 0 : i32
    %c0_i32_1 = arith.constant 0 : i32
    return %c0_i32, %c0_i32_0 : i32, i32
  }
  func.func @transform_3(%arg0: i32, %arg1: i32, %arg2: i32) -> (i32, i32) {
    %c0_i32 = arith.constant 0 : i32
    %c0_i32_0 = arith.constant 0 : i32
    %c0_i32_1 = arith.constant 0 : i32
    return %c0_i32, %c0_i32_0 : i32, i32
  }
  func.func @transform_4(%arg0: i32, %arg1: i32, %arg2: i32) -> (i32, i32) {
    %c0_i32 = arith.constant 0 : i32
    return %arg0, %arg1 : i32, i32
  }
}

</mosaic_0001>

<llo_original>
// kernel: lora_linear.1
$region0: #{lora_linear.1}
  #allocation0 [shape = 'u32[]', space=smem, size = 0x4, offset = 0x4, fixed_abs, tag = 'smem constant byte address 0x4 - core index']
  #allocation1 [shape = 'u32[144,128]{1,0:T(1,128)}', space=vmem, size = 0x12000, scoped, tag = 'internal scratch']
  #allocation2 [shape = 'f32[16,128]{1,0:T(8,128)}', space=vmem, size = 0x2000, scoped, tag = 'scratch operand']
  #allocation3 [shape = 'f32[16,8]{1,0:T(8,128)}', space=vmem, size = 0x2000, scoped, tag = 'scratch operand']
  %s0 = inlined_call_operand.vmem [shape: f32[16,128], index: 0, kind: input, shape index: {}]
  %s1 = inlined_call_operand.vmem [shape: f32[128,128], index: 1, kind: input, shape index: {}]
  %s2 = inlined_call_operand.vmem [shape: f32[128,8], index: 2, kind: input, shape index: {}]
  %s3 = inlined_call_operand.vmem [shape: f32[8,128], index: 3, kind: input, shape index: {}]
  %s4 = inlined_call_operand.vmem [shape: f32[16,128], index: 4, kind: output, shape index: {}]
  %s5 = sld [smem:[#allocation0]]
  $region38: #{lora_linear.1} parent=0
    _
  %s7 = ssub.s32 1, %s5
  %s8 = scalar_select 0, %s7, %s5
  // Predicated region
  $region2: #{lora_linear.1} parent=0 // pred_check
    _
  $region3: #{lora_linear.1} parent=0 // pred_check_branch
    %10 = sbr.rel (0) target = $region5
  $region4: #{lora_linear.1} parent=0 // pred_region
    _
  $region5: #{lora_linear.1} parent=0 // pred_fallthru
    _
  // Predicated region
  $region6: #{lora_linear.1} parent=0 // pred_check
    _
  $region7: #{lora_linear.1} parent=0 // pred_check_branch
    %12 = sbr.rel (0) target = $region9
  $region8: #{lora_linear.1} parent=0 // pred_region
    _
  $region9: #{lora_linear.1} parent=0 // pred_fallthru
    _
  // Predicated region
  $region10: #{lora_linear.1} parent=0 // pred_check
    _
  $region11: #{lora_linear.1} parent=0 // pred_check_branch
    %14 = sbr.rel (0) target = $region13
  $region12: #{lora_linear.1} parent=0 // pred_region
    _
  $region13: #{lora_linear.1} parent=0 // pred_fallthru
    _
  // Predicated region
  $region14: #{lora_linear.1} parent=0 // pred_check
    _
  $region15: #{lora_linear.1} parent=0 // pred_check_branch
    %16 = sbr.rel (0) target = $region17
  $region16: #{lora_linear.1} parent=0 // pred_region
    _
  $region17: #{lora_linear.1} parent=0 // pred_fallthru
    _
  %v17 = vld [vmem:[%s0] sm:$0xff]
  %v18 = vld [vmem:[%s0 + $0x8] sm:$0xff]
  %p19 = scmp.eq.s32.totalorder 0, 0
  // Predicated region
  $region18: #{lora_linear.1} parent=0 // pred_check
    %p20 = pneg %p19
  $region19: #{lora_linear.1} parent=0 // pred_check_branch
    %22 = sbr.rel (%p20) target = $region21
  $region20: #{lora_linear.1} parent=0 // pred_region
    %23 = vst [vmem:[#allocation2] sm:$0xff] 0.0
    %24 = vst [vmem:[#allocation2 + $0x8] sm:$0xff] 0.0
  $region21: #{lora_linear.1} parent=0 // pred_fallthru
    _
  %v25 = vld [vmem:[#allocation2] sm:$0xff]
  %v26 = vld [vmem:[#allocation2 + $0x8] sm:$0xff]
  %v27 = vld [vmem:[%s1] sm:$0xff]
  %v28 = vld [vmem:[%s1 + $0x8] sm:$0xff]
  %v29 = vld [vmem:[%s1 + $0x10] sm:$0xff]
  %v30 = vld [vmem:[%s1 + $0x18] sm:$0xff]
  %v31 = vld [vmem:[%s1 + $0x20] sm:$0xff]
  %v32 = vld [vmem:[%s1 + $0x28] sm:$0xff]
  %v33 = vld [vmem:[%s1 + $0x30] sm:$0xff]
  %v34 = vld [vmem:[%s1 + $0x38] sm:$0xff]
  %v35 = vld [vmem:[%s1 + $0x40] sm:$0xff]
  %v36 = vld [vmem:[%s1 + $0x48] sm:$0xff]
  %v37 = vld [vmem:[%s1 + $0x50] sm:$0xff]
  %v38 = vld [vmem:[%s1 + $0x58] sm:$0xff]
  %v39 = vld [vmem:[%s1 + $0x60] sm:$0xff]
  %v40 = vld [vmem:[%s1 + $0x68] sm:$0xff]
  %v41 = vld [vmem:[%s1 + $0x70] sm:$0xff]
  %v42 = vld [vmem:[%s1 + $0x78] sm:$0xff]
  %43 = vmatprep.subr.mxu0 0.0
  %44 = vmatpush1.msra.mxu0 %v27
  %45 = vmatprep.subr.mxu0 0.0
  %46 = vmatpush1.msra.mxu0 %v28
  %47 = vmatprep.subr.mxu0 0.0
  %48 = vmatpush1.msra.mxu0 %v29
  %49 = vmatprep.subr.mxu0 0.0
  %50 = vmatpush1.msra.mxu0 %v30
  %51 = vmatprep.subr.mxu0 0.0
  %52 = vmatpush1.msra.mxu0 %v31
  %53 = vmatprep.subr.mxu0 0.0
  %54 = vmatpush1.msra.mxu0 %v32
  %55 = vmatprep.subr.mxu0 0.0
  %56 = vmatpush1.msra.mxu0 %v33
  %57 = vmatprep.subr.mxu0 0.0
  %58 = vmatpush1.msra.mxu0 %v34
  %59 = vmatprep.subr.mxu0 0.0
  %60 = vmatpush1.msra.mxu0 %v35
  %61 = vmatprep.subr.mxu0 0.0
  %62 = vmatpush1.msra.mxu0 %v36
  %63 = vmatprep.subr.mxu0 0.0
  %64 = vmatpush1.msra.mxu0 %v37
  %65 = vmatprep.subr.mxu0 0.0
  %66 = vmatpush1.msra.mxu0 %v38
  %67 = vmatprep.subr.mxu0 0.0
  %68 = vmatpush1.msra.mxu0 %v39
  %69 = vmatprep.subr.mxu0 0.0
  %70 = vmatpush1.msra.mxu0 %v40
  %71 = vmatprep.subr.mxu0 0.0
  %72 = vmatpush1.msra.mxu0 %v41
  %73 = vmatprep.subr.mxu0 0.0
  %74 = vmatpush1.msra.mxu0 %v42
  %75 = vmatprep.subr.mxu0 0.0
  %76 = vmatpush1.msra.mxu0 0.0
  %77 = vmatprep.subr.mxu0 0.0
  %78 = vmatpush1.msra.mxu0 0.0
  %79 = vmatprep.subr.mxu0 0.0
  %80 = vmatpush1.msra.mxu0 0.0
  %81 = vmatprep.subr.mxu0 0.0
  %82 = vmatpush1.msra.mxu0 0.0
  %83 = vmatprep.subr.mxu0 0.0
  %84 = vmatpush1.msra.mxu0 0.0
  %85 = vmatprep.subr.mxu0 0.0
  %86 = vmatpush1.msra.mxu0 0.0
  %87 = vmatprep.subr.mxu0 0.0
  %88 = vmatpush1.msra.mxu0 0.0
  %89 = vmatprep.subr.mxu0 0.0
  %90 = vmatpush1.msra.mxu0 0.0
  %91 = vmatprep.subr.mxu0 0.0
  %92 = vmatpush1.msra.mxu0 0.0
  %93 = vmatprep.subr.mxu0 0.0
  %94 = vmatpush1.msra.mxu0 0.0
  %95 = vmatprep.subr.mxu0 0.0
  %96 = vmatpush1.msra.mxu0 0.0
  %97 = vmatprep.subr.mxu0 0.0
  %98 = vmatpush1.msra.mxu0 0.0
  %99 = vmatprep.subr.mxu0 0.0
  %100 = vmatpush1.msra.mxu0 0.0
  %101 = vmatprep.subr.mxu0 0.0
  %102 = vmatpush1.msra.mxu0 0.0
  %103 = vmatprep.subr.mxu0 0.0
  %104 = vmatpush1.msra.mxu0 0.0
  %105 = vmatprep.subr.mxu0 0.0
  %106 = vmatpush1.msra.mxu0 0.0
  %107 = vmatprep.mubr.f32.mxu0 0.0
  %108 = vmatmul.mubr.f32.gmra.mrb[0].mxu0 %v17
  %v109 = vpop.f32.mrb[0].mxu0
  %v110 = vadd.f32 0.0, %v109
  %v111 = vpop.f32.mrb[0].mxu0
  %112 = vmatprep.mubr.f32.mxu0 0.0
  %113 = vmatmul.mubr.f32.gmra.mrb[0].mxu0 %v18
  %v114 = vpop.f32.mrb[0].mxu0
  %v115 = vadd.f32 0.0, %v114
  %v116 = vpop.f32.mrb[0].mxu0
  %117 = vdwg.mxu0
  %v118 = vadd.f32 %v25, %v110
  %v119 = vadd.f32 %v26, %v115
  %120 = vst [vmem:[#allocation2] sm:$0xff] %v118
  %121 = vst [vmem:[#allocation2 + $0x8] sm:$0xff] %v119
  %s122 = smul.u32 0, 128
  %s123 = scalar_lea.vmem %s2, %s122
  %v124 = vld [vmem:[%s123] sm:$0xff]
  %v125 = vld [vmem:[%s123 + $0x8] sm:$0xff]
  %v126 = vld [vmem:[%s123 + $0x10] sm:$0xff]
  %v127 = vld [vmem:[%s123 + $0x18] sm:$0xff]
  %v128 = vld [vmem:[%s123 + $0x20] sm:$0xff]
  %v129 = vld [vmem:[%s123 + $0x28] sm:$0xff]
  %v130 = vld [vmem:[%s123 + $0x30] sm:$0xff]
  %v131 = vld [vmem:[%s123 + $0x38] sm:$0xff]
  %v132 = vld [vmem:[%s123 + $0x40] sm:$0xff]
  %v133 = vld [vmem:[%s123 + $0x48] sm:$0xff]
  %v134 = vld [vmem:[%s123 + $0x50] sm:$0xff]
  %v135 = vld [vmem:[%s123 + $0x58] sm:$0xff]
  %v136 = vld [vmem:[%s123 + $0x60] sm:$0xff]
  %v137 = vld [vmem:[%s123 + $0x68] sm:$0xff]
  %v138 = vld [vmem:[%s123 + $0x70] sm:$0xff]
  %v139 = vld [vmem:[%s123 + $0x78] sm:$0xff]
  // Predicated region
  $region22: #{lora_linear.1} parent=0 // pred_check
    %p140 = pneg %p19
  $region23: #{lora_linear.1} parent=0 // pred_check_branch
    %142 = sbr.rel (%p140) target = $region25
  $region24: #{lora_linear.1} parent=0 // pred_region
    %vm143 = vcmask 64512
    %144 = vst.msk [vmem:[#allocation3] sm:$0xff] %vm143, 0.0
    %145 = vst.msk [vmem:[#allocation3 + $0x8] sm:$0xff] %vm143, 0.0
  $region25: #{lora_linear.1} parent=0 // pred_fallthru
    _
  %v146 = vld [vmem:[#allocation3] sm:$0xff]
  %v147 = vld [vmem:[#allocation3 + $0x8] sm:$0xff]
  %148 = vmatprep.subr.mxu0 0.0
  %149 = vmatpush1.msra.mxu0 %v124
  %150 = vmatprep.subr.mxu0 0.0
  %151 = vmatpush1.msra.mxu0 %v125
  %152 = vmatprep.subr.mxu0 0.0
  %153 = vmatpush1.msra.mxu0 %v126
  %154 = vmatprep.subr.mxu0 0.0
  %155 = vmatpush1.msra.mxu0 %v127
  %156 = vmatprep.subr.mxu0 0.0
  %157 = vmatpush1.msra.mxu0 %v128
  %158 = vmatprep.subr.mxu0 0.0
  %159 = vmatpush1.msra.mxu0 %v129
  %160 = vmatprep.subr.mxu0 0.0
  %161 = vmatpush1.msra.mxu0 %v130
  %162 = vmatprep.subr.mxu0 0.0
  %163 = vmatpush1.msra.mxu0 %v131
  %164 = vmatprep.subr.mxu0 0.0
  %165 = vmatpush1.msra.mxu0 %v132
  %166 = vmatprep.subr.mxu0 0.0
  %167 = vmatpush1.msra.mxu0 %v133
  %168 = vmatprep.subr.mxu0 0.0
  %169 = vmatpush1.msra.mxu0 %v134
  %170 = vmatprep.subr.mxu0 0.0
  %171 = vmatpush1.msra.mxu0 %v135
  %172 = vmatprep.subr.mxu0 0.0
  %173 = vmatpush1.msra.mxu0 %v136
  %174 = vmatprep.subr.mxu0 0.0
  %175 = vmatpush1.msra.mxu0 %v137
  %176 = vmatprep.subr.mxu0 0.0
  %177 = vmatpush1.msra.mxu0 %v138
  %178 = vmatprep.subr.mxu0 0.0
  %179 = vmatpush1.msra.mxu0 %v139
  %180 = vmatprep.subr.mxu0 0.0
  %181 = vmatpush1.msra.mxu0 0.0
  %182 = vmatprep.subr.mxu0 0.0
  %183 = vmatpush1.msra.mxu0 0.0
  %184 = vmatprep.subr.mxu0 0.0
  %185 = vmatpush1.msra.mxu0 0.0
  %186 = vmatprep.subr.mxu0 0.0
  %187 = vmatpush1.msra.mxu0 0.0
  %188 = vmatprep.subr.mxu0 0.0
  %189 = vmatpush1.msra.mxu0 0.0
  %190 = vmatprep.subr.mxu0 0.0
  %191 = vmatpush1.msra.mxu0 0.0
  %192 = vmatprep.subr.mxu0 0.0
  %193 = vmatpush1.msra.mxu0 0.0
  %194 = vmatprep.subr.mxu0 0.0
  %195 = vmatpush1.msra.mxu0 0.0
  %196 = vmatprep.subr.mxu0 0.0
  %197 = vmatpush1.msra.mxu0 0.0
  %198 = vmatprep.subr.mxu0 0.0
  %199 = vmatpush1.msra.mxu0 0.0
  %200 = vmatprep.subr.mxu0 0.0
  %201 = vmatpush1.msra.mxu0 0.0
  %202 = vmatprep.subr.mxu0 0.0
  %203 = vmatpush1.msra.mxu0 0.0
  %204 = vmatprep.subr.mxu0 0.0
  %205 = vmatpush1.msra.mxu0 0.0
  %206 = vmatprep.subr.mxu0 0.0
  %207 = vmatpush1.msra.mxu0 0.0
  %208 = vmatprep.subr.mxu0 0.0
  %209 = vmatpush1.msra.mxu0 0.0
  %210 = vmatprep.subr.mxu0 0.0
  %211 = vmatpush1.msra.mxu0 0.0
  %212 = vmatprep.mubr.f32.mxu0 0.0
  %213 = vmatmul.mubr.f32.gmra.mrb[0].mxu0 %v17
  %v214 = vpop.f32.mrb[0].mxu0
  %v215 = vadd.f32 0.0, %v214
  %v216 = vpop.f32.mrb[0].mxu0
  %217 = vmatprep.mubr.f32.mxu0 0.0
  %218 = vmatmul.mubr.f32.gmra.mrb[0].mxu0 %v18
  %v219 = vpop.f32.mrb[0].mxu0
  %v220 = vadd.f32 0.0, %v219
  %v221 = vpop.f32.mrb[0].mxu0
  %222 = vdwg.mxu0
  %v223 = vadd.f32 %v146, %v215
  %v224 = vadd.f32 %v147, %v220
  %vm225 = vcmask 64512
  %226 = vst.msk [vmem:[#allocation3] sm:$0xff] %vm225, %v223
  %227 = vst.msk [vmem:[#allocation3 + $0x8] sm:$0xff] %vm225, %v224
  // Predicated region
  $region26: #{lora_linear.1} parent=0 // pred_check
    %p228 = pneg %p19
  $region27: #{lora_linear.1} parent=0 // pred_check_branch
    %230 = sbr.rel (%p228) target = $region29
  $region28: #{lora_linear.1} parent=0 // pred_region
    %s231 = smul.u32 0, 128
    %s232 = sshra.s32 %s231, 7
    %s233 = sand.u32 %s231, 127
    %s234 = scalar_lea.vmem %s3, %s232
    %v235 = vld [vmem:[%s234] sm:$0xff]
    %v236 = vld [vmem:[#allocation3] sm:$0xff]
    %v237 = vld [vmem:[#allocation3 + $0x8] sm:$0xff]
    %v239 = vsel %vm225, %v236, 0
    %v242 = vsel %vm225, %v237, 0
    %244 = vmatprep.subr.mxu0 0.0
    %245 = vmatpush1.msra.mxu0 %v235
    %246 = vmatprep.subr.mxu0 0.0
    %247 = vmatpush1.msra.mxu0 0.0
    %248 = vmatprep.subr.mxu0 0.0
    %249 = vmatpush1.msra.mxu0 0.0
    %250 = vmatprep.subr.mxu0 0.0
    %251 = vmatpush1.msra.mxu0 0.0
    %252 = vmatprep.subr.mxu0 0.0
    %253 = vmatpush1.msra.mxu0 0.0
    %254 = vmatprep.subr.mxu0 0.0
    %255 = vmatpush1.msra.mxu0 0.0
    %256 = vmatprep.subr.mxu0 0.0
    %257 = vmatpush1.msra.mxu0 0.0
    %258 = vmatprep.subr.mxu0 0.0
    %259 = vmatpush1.msra.mxu0 0.0
    %260 = vmatprep.subr.mxu0 0.0
    %261 = vmatpush1.msra.mxu0 0.0
    %262 = vmatprep.subr.mxu0 0.0
    %263 = vmatpush1.msra.mxu0 0.0
    %264 = vmatprep.subr.mxu0 0.0
    %265 = vmatpush1.msra.mxu0 0.0
    %266 = vmatprep.subr.mxu0 0.0
    %267 = vmatpush1.msra.mxu0 0.0
    %268 = vmatprep.subr.mxu0 0.0
    %269 = vmatpush1.msra.mxu0 0.0
    %270 = vmatprep.subr.mxu0 0.0
    %271 = vmatpush1.msra.mxu0 0.0
    %272 = vmatprep.subr.mxu0 0.0
    %273 = vmatpush1.msra.mxu0 0.0
    %274 = vmatprep.subr.mxu0 0.0
    %275 = vmatpush1.msra.mxu0 0.0
    %276 = vmatprep.subr.mxu0 0.0
    %277 = vmatpush1.msra.mxu0 0.0
    %278 = vmatprep.subr.mxu0 0.0
    %279 = vmatpush1.msra.mxu0 0.0
    %280 = vmatprep.subr.mxu0 0.0
    %281 = vmatpush1.msra.mxu0 0.0
    %282 = vmatprep.subr.mxu0 0.0
    %283 = vmatpush1.msra.mxu0 0.0
    %284 = vmatprep.subr.mxu0 0.0
    %285 = vmatpush1.msra.mxu0 0.0
    %286 = vmatprep.subr.mxu0 0.0
    %287 = vmatpush1.msra.mxu0 0.0
    %288 = vmatprep.subr.mxu0 0.0
    %289 = vmatpush1.msra.mxu0 0.0
    %290 = vmatprep.subr.mxu0 0.0
    %291 = vmatpush1.msra.mxu0 0.0
    %292 = vmatprep.subr.mxu0 0.0
    %293 = vmatpush1.msra.mxu0 0.0
    %294 = vmatprep.subr.mxu0 0.0
    %295 = vmatpush1.msra.mxu0 0.0
    %296 = vmatprep.subr.mxu0 0.0
    %297 = vmatpush1.msra.mxu0 0.0
    %298 = vmatprep.subr.mxu0 0.0
    %299 = vmatpush1.msra.mxu0 0.0
    %300 = vmatprep.subr.mxu0 0.0
    %301 = vmatpush1.msra.mxu0 0.0
    %302 = vmatprep.subr.mxu0 0.0
    %303 = vmatpush1.msra.mxu0 0.0
    %304 = vmatprep.subr.mxu0 0.0
    %305 = vmatpush1.msra.mxu0 0.0
    %306 = vmatprep.subr.mxu0 0.0
    %307 = vmatpush1.msra.mxu0 0.0
    %308 = vmatprep.mubr.f32.mxu0 0.0
    %309 = vmatmul.mubr.f32.gmra.mrb[0].mxu0 %v239
    %v310 = vpop.f32.mrb[0].mxu0
    %v311 = vadd.f32 0.0, %v310
    %v312 = vpop.f32.mrb[0].mxu0
    %313 = vmatprep.mubr.f32.mxu0 0.0
    %314 = vmatmul.mubr.f32.gmra.mrb[0].mxu0 %v242
    %v315 = vpop.f32.mrb[0].mxu0
    %v316 = vadd.f32 0.0, %v315
    %v317 = vpop.f32.mrb[0].mxu0
    %318 = vdwg.mxu0
    %v319 = vld [vmem:[#allocation2] sm:$0xff]
    %v320 = vld [vmem:[#allocation2 + $0x8] sm:$0xff]
    %v321 = vadd.f32 %v319, %v311
    %v322 = vadd.f32 %v320, %v316
    %323 = vst [vmem:[%s4] sm:$0xff] %v321
    %324 = vst [vmem:[%s4 + $0x8] sm:$0xff] %v322
  $region29: #{lora_linear.1} parent=0 // pred_fallthru
    _
  // Predicated region
  $region30: #{lora_linear.1} parent=0 // pred_check
    _
  $region31: #{lora_linear.1} parent=0 // pred_check_branch
    %326 = sbr.rel (0) target = $region33
  $region32: #{lora_linear.1} parent=0 // pred_region
    _
  $region33: #{lora_linear.1} parent=0 // pred_fallthru
    _
  // Predicated region
  $region34: #{lora_linear.1} parent=0 // pred_check
    _
  $region35: #{lora_linear.1} parent=0 // pred_check_branch
    %328 = sbr.rel (0) target = $region37
  $region36: #{lora_linear.1} parent=0 // pred_region
    _
  $region37: #{lora_linear.1} parent=0 // pred_fallthru
    _

</llo_original>
